<compile_context>
chip_gen: v7x
topology: tpu7x:2x2x1
jax: 0.10.0
libtpu: 0.0.40
codegen_flags: <defaults>
</compile_context>

<pallas_src>
import functools

import jax
import jax.numpy as jnp
from jax.experimental import pallas as pl
from jax.experimental.pallas import tpu as pltpu

BN_EPS = 1e-5
LANE = 128
_VMEM_BUDGET_BYTES = 16 * 1024 * 1024   # fast-path residency budget (v7x-safe)
_VMEM_LIMIT_BYTES = 32 * 1024 * 1024


# --------------------------------------------------------------------------
# Fast path: whole problem resident in VMEM, a single grid step.
# --------------------------------------------------------------------------
def _prober_fused_kernel(x_ref, w1_ref, gamma_ref, beta_ref, w2_ref, b2_ref,
                         out_ref, *, out_dim):
    # Linear-1 on the MXU (bf16 or f32 inputs, f32 accumulation).
    h = jnp.dot(x_ref[...], w1_ref[...], preferred_element_type=jnp.float32)
    # Training-mode BatchNorm statistics over the (resident) batch.
    # Two-pass variance: no E[h^2] - mean^2 cancellation.
    mean = jnp.mean(h, axis=0, keepdims=True)
    var = jnp.mean(jnp.square(h - mean), axis=0, keepdims=True)
    scale = gamma_ref[...] * jax.lax.rsqrt(var + BN_EPS)
    bias = beta_ref[...] - mean * scale
    # BN folded into one FMA, then ReLU (f32 elementwise on every chip gen).
    h_act = jnp.maximum(h * scale + bias, 0.0)
    # Linear-2 on the MXU (lane-dense, 128-padded w2); bias into the f32
    # accumulator; store only the out_dim useful lanes (dense output stream).
    out = jnp.dot(h_act.astype(w2_ref.dtype), w2_ref[...],
                  preferred_element_type=jnp.float32) + b2_ref[...]
    out_ref[...] = out[:, :out_dim].astype(out_ref.dtype)


def _run_fused(x, w1, gamma, beta, w2p, b2p, out_dim):
    batch, in_dim = x.shape
    hidden = w1.shape[1]
    n_pad = w2p.shape[1]
    kernel = functools.partial(_prober_fused_kernel, out_dim=out_dim)
    return pl.pallas_call(
        kernel,
        out_shape=jax.ShapeDtypeStruct((batch, out_dim), jnp.float32),
        grid=(1,),
        in_specs=[
            pl.BlockSpec((batch, in_dim), lambda i: (0, 0)),
            pl.BlockSpec((in_dim, hidden), lambda i: (0, 0)),
            pl.BlockSpec((1, hidden), lambda i: (0, 0)),
            pl.BlockSpec((1, hidden), lambda i: (0, 0)),
            pl.BlockSpec((hidden, n_pad), lambda i: (0, 0)),
            pl.BlockSpec((1, n_pad), lambda i: (0, 0)),
        ],
        out_specs=pl.BlockSpec((batch, out_dim), lambda i: (0, 0)),
        compiler_params=pltpu.CompilerParams(
            dimension_semantics=("arbitrary",),
            vmem_limit_bytes=_VMEM_LIMIT_BYTES,
        ),
    )(x, w1, gamma, beta, w2p, b2p)


# --------------------------------------------------------------------------
# Large-batch fallback: stats pass + project pass, both batch-parallel.
# --------------------------------------------------------------------------
def _stats_kernel(x_ref, w1_ref, mean_ref, m2_ref):
    h = jnp.dot(x_ref[...], w1_ref[...], preferred_element_type=jnp.float32)
    mean_t = jnp.mean(h, axis=0, keepdims=True)                      # (1, H)
    m2_t = jnp.sum(jnp.square(h - mean_t), axis=0, keepdims=True)    # (1, H)
    mean_ref[...] = mean_t[None]                                     # (1,1,H)
    m2_ref[...] = m2_t[None]


def _project_kernel(x_ref, w1_ref, scale_ref, bias_ref, w2_ref, b2_ref,
                    out_ref, *, out_dim):
    h = jnp.dot(x_ref[...], w1_ref[...], preferred_element_type=jnp.float32)
    h_act = jnp.maximum(h * scale_ref[...] + bias_ref[...], 0.0)
    out = jnp.dot(h_act.astype(w2_ref.dtype), w2_ref[...],
                  preferred_element_type=jnp.float32) + b2_ref[...]
    out_ref[...] = out[:, :out_dim].astype(out_ref.dtype)


def _run_tiled(x, w1, gamma, beta, w2p, b2p, out_dim, tile_b):
    batch, in_dim = x.shape
    hidden = w1.shape[1]
    n_pad = w2p.shape[1]
    nb = batch // tile_b

    # Pass 1: per-tile partial statistics (batch axis "parallel" -> can be
    # split across TensorCores on v7x).
    mean_t, m2_t = pl.pallas_call(
        _stats_kernel,
        out_shape=(jax.ShapeDtypeStruct((nb, 1, hidden), jnp.float32),
                   jax.ShapeDtypeStruct((nb, 1, hidden), jnp.float32)),
        grid=(nb,),
        in_specs=[
            pl.BlockSpec((tile_b, in_dim), lambda i: (i, 0)),
            pl.BlockSpec((in_dim, hidden), lambda i: (0, 0)),
        ],
        out_specs=(pl.BlockSpec((1, 1, hidden), lambda i: (i, 0, 0)),
                   pl.BlockSpec((1, 1, hidden), lambda i: (i, 0, 0))),
        compiler_params=pltpu.CompilerParams(
            dimension_semantics=("parallel",),
            vmem_limit_bytes=_VMEM_LIMIT_BYTES,
        ),
    )(x, w1)

    # Tiny pooled-variance combine + BN scale/bias prep in plain JAX (computed
    # exactly once, not per tile).  Equal tile sizes by construction.
    mean_t = mean_t[:, 0, :]                                   # (nb, H)
    m2_t = m2_t[:, 0, :]
    mean = jnp.mean(mean_t, axis=0, keepdims=True)             # (1, H)
    var = (jnp.sum(m2_t, axis=0, keepdims=True)
           + tile_b * jnp.sum(jnp.square(mean_t - mean), axis=0, keepdims=True)
           ) / batch
    scale = gamma * jax.lax.rsqrt(var + BN_EPS)                # (1, H) f32
    bias = beta - mean * scale

    # Pass 2: normalize + project, fully batch-parallel.
    kernel = functools.partial(_project_kernel, out_dim=out_dim)
    return pl.pallas_call(
        kernel,
        out_shape=jax.ShapeDtypeStruct((batch, out_dim), jnp.float32),
        grid=(nb,),
        in_specs=[
            pl.BlockSpec((tile_b, in_dim), lambda i: (i, 0)),
            pl.BlockSpec((in_dim, hidden), lambda i: (0, 0)),
            pl.BlockSpec((1, hidden), lambda i: (0, 0)),
            pl.BlockSpec((1, hidden), lambda i: (0, 0)),
            pl.BlockSpec((hidden, n_pad), lambda i: (0, 0)),
            pl.BlockSpec((1, n_pad), lambda i: (0, 0)),
        ],
        out_specs=pl.BlockSpec((tile_b, out_dim), lambda i: (i, 0)),
        compiler_params=pltpu.CompilerParams(
            dimension_semantics=("parallel",),
            vmem_limit_bytes=_VMEM_LIMIT_BYTES,
        ),
    )(x, w1, scale, bias, w2p, b2p)


def _pick_tile_b(batch):
    # Large tiles amortize per-grid-step overhead; all stay well under the
    # 32 MiB scoped VMEM at H=256 (re-check if hidden grows, esp. on v7x).
    for cand in (4096, 2048, 1024, 512, 256, 128, 64, 32, 16, 8):
        if cand <= batch and batch % cand == 0:
            return cand
    return None


# --------------------------------------------------------------------------
# Public wrapper.
# --------------------------------------------------------------------------
def prober_forward(x, params, *, matmul_dtype=jnp.bfloat16, tile_b=None,
                   force_tiled=False):
    """Prober forward: Linear -> BatchNorm1d(training) -> ReLU -> Linear."""
    w1, b1, gamma, beta, w2, b2 = params
    del b1  # Folded out: a per-feature constant cancels under training-mode BN.
    # TODO(synk): BatchNorm running_mean/running_var buffer updates (training
    # side effects, not part of the forward value) are not produced.

    batch, in_dim = x.shape
    hidden = w1.shape[1]
    out_dim = w2.shape[1]

    # Cast MXU operands once in the wrapper (bf16 in HBM halves read bytes and
    # removes per-grid-step VPU converts); BN/elementwise math stays f32.
    x_m = x.astype(matmul_dtype)
    w1_m = w1.astype(matmul_dtype)

    # 128-lane-padded, VMEM-resident second-matmul operands; the kernels store
    # only the out_dim useful lanes so the HBM output stream stays dense.
    n_pad = max(LANE, ((out_dim + LANE - 1) // LANE) * LANE)
    w2p = jnp.pad(w2, ((0, 0), (0, n_pad - out_dim))).astype(matmul_dtype)
    b2p = jnp.pad(b2, ((0, 0), (0, n_pad - out_dim))).astype(jnp.float32)
    gamma_f = gamma.astype(jnp.float32)
    beta_f = beta.astype(jnp.float32)

    itemsize = jnp.dtype(matmul_dtype).itemsize
    fused_bytes = (batch * (in_dim * itemsize + 2 * hidden * 4 + n_pad * 4)
                   + (in_dim * hidden + hidden * n_pad) * itemsize
                   + 6 * hidden * 4)

    if not force_tiled and fused_bytes <= _VMEM_BUDGET_BYTES:
        return _run_fused(x_m, w1_m, gamma_f, beta_f, w2p, b2p, out_dim)

    if tile_b is None or batch % tile_b != 0:
        tile_b = _pick_tile_b(batch)
    if tile_b is None:
        # No clean batch tiling available; keep the resident kernel.
        return _run_fused(x_m, w1_m, gamma_f, beta_f, w2p, b2p, out_dim)
    return _run_tiled(x_m, w1_m, gamma_f, beta_f, w2p, b2p, out_dim, tile_b)


# --------------------------------------------------------------------------
# Init / reference (mirror the PyTorch module).
# --------------------------------------------------------------------------
def init_prober_params(key, input_dim, hidden_dim, output_dim):
    """Deterministic init mimicking torch.nn.Linear defaults (U(+-1/sqrt(fan_in)))."""
    k1, k2, k3, k4 = jax.random.split(key, 4)
    bound1 = 1.0 / jnp.sqrt(input_dim)
    w1 = jax.random.uniform(k1, (input_dim, hidden_dim), jnp.float32, -bound1, bound1)
    b1 = jax.random.uniform(k2, (1, hidden_dim), jnp.float32, -bound1, bound1)
    gamma = jnp.ones((1, hidden_dim), jnp.float32)
    beta = jnp.zeros((1, hidden_dim), jnp.float32)
    bound2 = 1.0 / jnp.sqrt(hidden_dim)
    w2 = jax.random.uniform(k3, (hidden_dim, output_dim), jnp.float32, -bound2, bound2)
    b2 = jax.random.uniform(k4, (1, output_dim), jnp.float32, -bound2, bound2)
    return (w1, b1, gamma, beta, w2, b2)


def reference_forward(x, params):
    """Pure-JAX reference replicating the PyTorch forward (training-mode BN, with b1)."""
    w1, b1, gamma, beta, w2, b2 = params
    h = x @ w1 + b1
    mean = jnp.mean(h, axis=0, keepdims=True)
    var = jnp.mean((h - mean) ** 2, axis=0, keepdims=True)
    h = (h - mean) / jnp.sqrt(var + BN_EPS) * gamma + beta
    h = jnp.maximum(h, 0.0)
    return h @ w2 + b2


if __name__ == "__main__":
    key = jax.random.PRNGKey(0)
    k_x, k_p = jax.random.split(key)

    B = 64            # batch (training-mode BatchNorm1d needs B > 1)
    input_dim = 32    # prober input feature dim
    hidden_dim = 256  # arch='256'
    output_dim = 2    # output_shape=(2,)

    x = jax.random.normal(k_x, (B, input_dim), jnp.float32)
    params = init_prober_params(k_p, input_dim, hidden_dim, output_dim)
    ref = reference_forward(x, params)

    # Fast path (single resident grid step), f32 MXU inputs: tight tolerance.
    out_f32 = jax.block_until_ready(
        prober_forward(x, params, matmul_dtype=jnp.float32))
    assert out_f32.shape == (B, output_dim)
    assert jnp.allclose(out_f32, ref, atol=1e-3, rtol=1e-3), "fused f32 mismatch"

    # Fast path, default bf16 MXU inputs (f32 accumulation, f32 BN math).
    out_bf16 = jax.block_until_ready(prober_forward(x, params))
    assert out_bf16.shape == (B, output_dim)
    assert jnp.allclose(out_bf16, ref, atol=5e-2, rtol=5e-2), "fused bf16 mismatch"

    # Large-batch fallback (stats + project pallas_calls), forced at small shape.
    out_tiled = jax.block_until_ready(
        prober_forward(x, params, matmul_dtype=jnp.float32,
                       force_tiled=True, tile_b=16))
    assert out_tiled.shape == (B, output_dim)
    assert jnp.allclose(out_tiled, ref, atol=1e-3, rtol=1e-3), "tiled f32 mismatch"

    out_tiled_bf16 = jax.block_until_ready(
        prober_forward(x, params, force_tiled=True, tile_b=16))
    assert jnp.allclose(out_tiled_bf16, ref, atol=5e-2, rtol=5e-2), "tiled bf16 mismatch"

    print("KERNEL_OK")
</pallas_src>

<mosaic_0001>
module attributes {stable_mosaic.version = 11 : i64} {
  func.func @_prober_fused_kernel(%arg0: i32, %arg1: memref<64x32xf32, #tpu.memory_space<vmem>>, %arg2: memref<32x256xf32, #tpu.memory_space<vmem>>, %arg3: memref<1x256xf32, #tpu.memory_space<vmem>>, %arg4: memref<1x256xf32, #tpu.memory_space<vmem>>, %arg5: memref<256x128xf32, #tpu.memory_space<vmem>>, %arg6: memref<1x128xf32, #tpu.memory_space<vmem>>, %arg7: memref<64x2xf32, #tpu.memory_space<vmem>>) attributes {dimension_semantics = [#tpu.dimension_semantics<arbitrary>], iteration_bounds = array<i64: 1>, scalar_prefetch = 0 : i64, scratch_operands = 0 : i64, tpu.core_type = #tpu.core_type<tc>, window_params = [{pipeline_mode = #tpu.pipeline_mode<synchronous>, transform_indices = @transform_0, window_bounds = array<i64: 64, 32>}, {pipeline_mode = #tpu.pipeline_mode<synchronous>, transform_indices = @transform_1, window_bounds = array<i64: 32, 256>}, {pipeline_mode = #tpu.pipeline_mode<synchronous>, transform_indices = @transform_2, window_bounds = array<i64: 1, 256>}, {pipeline_mode = #tpu.pipeline_mode<synchronous>, transform_indices = @transform_3, window_bounds = array<i64: 1, 256>}, {pipeline_mode = #tpu.pipeline_mode<synchronous>, transform_indices = @transform_4, window_bounds = array<i64: 256, 128>}, {pipeline_mode = #tpu.pipeline_mode<synchronous>, transform_indices = @transform_5, window_bounds = array<i64: 1, 128>}, {pipeline_mode = #tpu.pipeline_mode<synchronous>, transform_indices = @transform_6, window_bounds = array<i64: 64, 2>}]} {
    %c0 = arith.constant 0 : index
    %c0_0 = arith.constant 0 : index
    %0 = vector.load %arg1[%c0, %c0_0] : memref<64x32xf32, #tpu.memory_space<vmem>>, vector<64x32xf32>
    %c0_1 = arith.constant 0 : index
    %c0_2 = arith.constant 0 : index
    %1 = vector.load %arg2[%c0_1, %c0_2] : memref<32x256xf32, #tpu.memory_space<vmem>>, vector<32x256xf32>
    %cst = arith.constant dense<0.000000e+00> : vector<64x256xf32>
    %2 = tpu.matmul %0, %1, %cst {dimension_numbers = #tpu.dot_dimension_numbers<[1], [0], [0], [1], [0, 0, 1, 1], [], []>} : vector<64x32xf32>, vector<32x256xf32>, vector<64x256xf32> -> vector<64x256xf32>
    %cst_3 = arith.constant dense<0.000000e+00> : vector<256xf32>
    %3 = vector.multi_reduction <add>, %2, %cst_3 [0] : vector<64x256xf32> to vector<256xf32>
    %4 = vector.shape_cast %3 : vector<256xf32> to vector<1x256xf32>
    %cst_4 = arith.constant 6.400000e+01 : f32
    %5 = vector.broadcast %cst_4 : f32 to vector<1x256xf32>
    %6 = arith.divf %4, %5 : vector<1x256xf32>
    %7 = vector.broadcast %6 : vector<1x256xf32> to vector<64x256xf32>
    %8 = arith.subf %2, %7 : vector<64x256xf32>
    %9 = arith.mulf %8, %8 : vector<64x256xf32>
    %cst_5 = arith.constant dense<0.000000e+00> : vector<256xf32>
    %10 = vector.multi_reduction <add>, %9, %cst_5 [0] : vector<64x256xf32> to vector<256xf32>
    %11 = vector.shape_cast %10 : vector<256xf32> to vector<1x256xf32>
    %cst_6 = arith.constant 6.400000e+01 : f32
    %12 = vector.broadcast %cst_6 : f32 to vector<1x256xf32>
    %13 = arith.divf %11, %12 : vector<1x256xf32>
    %c0_7 = arith.constant 0 : index
    %c0_8 = arith.constant 0 : index
    %14 = vector.load %arg3[%c0_7, %c0_8] : memref<1x256xf32, #tpu.memory_space<vmem>>, vector<1x256xf32>
    %cst_9 = arith.constant 9.99999974E-6 : f32
    %15 = vector.broadcast %cst_9 : f32 to vector<1x256xf32>
    %16 = arith.addf %13, %15 : vector<1x256xf32>
    %17 = math.rsqrt %16 : vector<1x256xf32>
    %18 = arith.mulf %14, %17 : vector<1x256xf32>
    %c0_10 = arith.constant 0 : index
    %c0_11 = arith.constant 0 : index
    %19 = vector.load %arg4[%c0_10, %c0_11] : memref<1x256xf32, #tpu.memory_space<vmem>>, vector<1x256xf32>
    %20 = arith.mulf %6, %18 : vector<1x256xf32>
    %21 = arith.subf %19, %20 : vector<1x256xf32>
    %22 = vector.broadcast %18 : vector<1x256xf32> to vector<64x256xf32>
    %23 = arith.mulf %2, %22 : vector<64x256xf32>
    %24 = vector.broadcast %21 : vector<1x256xf32> to vector<64x256xf32>
    %25 = arith.addf %23, %24 : vector<64x256xf32>
    %cst_12 = arith.constant 0.000000e+00 : f32
    %26 = vector.broadcast %cst_12 : f32 to vector<64x256xf32>
    %27 = arith.maximumf %25, %26 : vector<64x256xf32>
    %c0_13 = arith.constant 0 : index
    %c0_14 = arith.constant 0 : index
    %28 = vector.load %arg5[%c0_13, %c0_14] : memref<256x128xf32, #tpu.memory_space<vmem>>, vector<256x128xf32>
    %cst_15 = arith.constant dense<0.000000e+00> : vector<64x128xf32>
    %29 = tpu.matmul %27, %28, %cst_15 {dimension_numbers = #tpu.dot_dimension_numbers<[1], [0], [0], [1], [0, 0, 1, 1], [], []>} : vector<64x256xf32>, vector<256x128xf32>, vector<64x128xf32> -> vector<64x128xf32>
    %c0_16 = arith.constant 0 : index
    %c0_17 = arith.constant 0 : index
    %30 = vector.load %arg6[%c0_16, %c0_17] : memref<1x128xf32, #tpu.memory_space<vmem>>, vector<1x128xf32>
    %31 = vector.broadcast %30 : vector<1x128xf32> to vector<64x128xf32>
    %32 = arith.addf %29, %31 : vector<64x128xf32>
    %33 = vector.extract_strided_slice %32 {offsets = [0, 0], sizes = [64, 2], strides = [1, 1]} : vector<64x128xf32> to vector<64x2xf32>
    %c0_18 = arith.constant 0 : index
    %c0_19 = arith.constant 0 : index
    %34 = vector.load %arg7[%c0_18, %c0_19] : memref<64x2xf32, #tpu.memory_space<vmem>>, vector<64x2xf32>
    tpu.vector_store %arg7[%c0_18, %c0_19], %33 {strides = array<i32>} : memref<64x2xf32, #tpu.memory_space<vmem>>, vector<64x2xf32>,
    return
  }
  func.func @transform_0(%arg0: i32) -> (i32, i32) {
    %c0_i32 = arith.constant 0 : i32
    %c0_i32_0 = arith.constant 0 : i32
    %c0_i32_1 = arith.constant 0 : i32
    return %c0_i32, %c0_i32_0 : i32, i32
  }
  func.func @transform_1(%arg0: i32) -> (i32, i32) {
    %c0_i32 = arith.constant 0 : i32
    %c0_i32_0 = arith.constant 0 : i32
    %c0_i32_1 = arith.constant 0 : i32
    return %c0_i32, %c0_i32_0 : i32, i32
  }
  func.func @transform_2(%arg0: i32) -> (i32, i32) {
    %c0_i32 = arith.constant 0 : i32
    %c0_i32_0 = arith.constant 0 : i32
    %c0_i32_1 = arith.constant 0 : i32
    return %c0_i32, %c0_i32_0 : i32, i32
  }
  func.func @transform_3(%arg0: i32) -> (i32, i32) {
    %c0_i32 = arith.constant 0 : i32
    %c0_i32_0 = arith.constant 0 : i32
    %c0_i32_1 = arith.constant 0 : i32
    return %c0_i32, %c0_i32_0 : i32, i32
  }
  func.func @transform_4(%arg0: i32) -> (i32, i32) {
    %c0_i32 = arith.constant 0 : i32
    %c0_i32_0 = arith.constant 0 : i32
    %c0_i32_1 = arith.constant 0 : i32
    return %c0_i32, %c0_i32_0 : i32, i32
  }
  func.func @transform_5(%arg0: i32) -> (i32, i32) {
    %c0_i32 = arith.constant 0 : i32
    %c0_i32_0 = arith.constant 0 : i32
    %c0_i32_1 = arith.constant 0 : i32
    return %c0_i32, %c0_i32_0 : i32, i32
  }
  func.func @transform_6(%arg0: i32) -> (i32, i32) {
    %c0_i32 = arith.constant 0 : i32
    %c0_i32_0 = arith.constant 0 : i32
    %c0_i32_1 = arith.constant 0 : i32
    return %c0_i32, %c0_i32_0 : i32, i32
  }
}

</mosaic_0001>

<llo_original>
// kernel: tpu_custom_call.1
$region0: #{tpu_custom_call.1}
  #allocation0 [shape = 'u32[]', space=smem, size = 0x4, offset = 0x4, fixed_abs, tag = 'smem constant byte address 0x4 - core index']
  #allocation1 [shape = 'u32[144,128]{1,0:T(1,128)}', space=vmem, size = 0x12000, scoped, tag = 'internal scratch']
  %s0 = inlined_call_operand.vmem [shape: f32[64,32], index: 0, kind: input, shape index: {}]
  %s1 = inlined_call_operand.vmem [shape: f32[32,256], index: 1, kind: input, shape index: {}]
  %s2 = inlined_call_operand.vmem [shape: f32[1,256], index: 2, kind: input, shape index: {}]
  %s3 = inlined_call_operand.vmem [shape: f32[1,256], index: 3, kind: input, shape index: {}]
  %s4 = inlined_call_operand.hbm [shape: f32[256,128], index: 4, kind: input, shape index: {}]
  %s5 = inlined_call_operand.vmem [shape: f32[1,128], index: 5, kind: input, shape index: {}]
  %s6 = inlined_call_operand.vmem [shape: f32[64,2], index: 6, kind: output, shape index: {}]
  %s7 = sld [smem:[#allocation0]]
  $region38: #{tpu_custom_call.1} parent=0
    _
  %s9 = ssub.s32 1, %s7
  %s10 = scalar_select 0, %s9, %s7
  $region1: #{tpu_custom_call.1} parent=0
    #allocation2 [shape = 'u8[131072]{0}', space=vmem, size = 0x20000, scoped, tag = 'input window, operand 4, single buffered']
    #allocation3 [shape = 's32[1]{0}', space=sflag, size = 0x4, scoped, tag = 'scoped memory for tpu_custom_call.1']
    %11 = vsyncpa [#allocation3], 0
    // Predicated region
    $region2: #{tpu_custom_call.1} parent=1 // pred_check
      _
    $region3: #{tpu_custom_call.1} parent=1 // pred_check_branch
      %13 = sbr.rel (0) target = $region5
    $region4: #{tpu_custom_call.1} parent=1 // pred_region
      _
    $region5: #{tpu_custom_call.1} parent=1 // pred_fallthru
      _
    // Predicated region
    $region6: #{tpu_custom_call.1} parent=1 // pred_check
      _
    $region7: #{tpu_custom_call.1} parent=1 // pred_check_branch
      %15 = sbr.rel (0) target = $region9
    $region8: #{tpu_custom_call.1} parent=1 // pred_region
      _
    $region9: #{tpu_custom_call.1} parent=1 // pred_fallthru
      _
    // Predicated region
    $region10: #{tpu_custom_call.1} parent=1 // pred_check
      _
    $region11: #{tpu_custom_call.1} parent=1 // pred_check_branch
      %17 = sbr.rel (0) target = $region13
    $region12: #{tpu_custom_call.1} parent=1 // pred_region
      _
    $region13: #{tpu_custom_call.1} parent=1 // pred_fallthru
      _
    // Predicated region
    $region14: #{tpu_custom_call.1} parent=1 // pred_check
      _
    $region15: #{tpu_custom_call.1} parent=1 // pred_check_branch
      %19 = sbr.rel (0) target = $region17
    $region16: #{tpu_custom_call.1} parent=1 // pred_region
      _
    $region17: #{tpu_custom_call.1} parent=1 // pred_fallthru
      _
    // Predicated region
    $region18: #{tpu_custom_call.1} parent=1 // pred_check
      _
    $region19: #{tpu_custom_call.1} parent=1 // pred_check_branch
      %21 = sbr.rel (0) target = $region21
    $region20: #{tpu_custom_call.1} parent=1 // pred_region
      %s23 = ssub.s32 4096, 4096
      %24 = vsyncadd [#allocation3], %s23
      %s25 = sshll.u32 [#allocation2], 4
      %s26 = int_to_ptr.vmem [resolvable:$true] %s25
      %31 = dma.hbm_to_vmem [thread:$0]  %s4, 4096, %s26, [#allocation3], 128, 128, 8
    $region21: #{tpu_custom_call.1} parent=1 // pred_fallthru
      _
    // Predicated region
    $region22: #{tpu_custom_call.1} parent=1 // pred_check
      _
    $region23: #{tpu_custom_call.1} parent=1 // pred_check_branch
      %33 = sbr.rel (0) target = $region25
    $region24: #{tpu_custom_call.1} parent=1 // pred_region
      _
    $region25: #{tpu_custom_call.1} parent=1 // pred_fallthru
      _
    // Predicated region
    $region26: #{tpu_custom_call.1} parent=1 // pred_check
      _
    $region27: #{tpu_custom_call.1} parent=1 // pred_check_branch
      %35 = sbr.rel (0) target = $region29
    $region28: #{tpu_custom_call.1} parent=1 // pred_region
      %36 = dma.done [#allocation3], 4096
    $region29: #{tpu_custom_call.1} parent=1 // pred_fallthru
      _
    %v37 = vld [vmem:[%s0] sm:$0xff]
    %v38 = vld [vmem:[%s0 + $0x8] sm:$0xff]
    %v39 = vld [vmem:[%s0 + $0x10] sm:$0xff]
    %v40 = vld [vmem:[%s0 + $0x18] sm:$0xff]
    %v41 = vld [vmem:[%s0 + $0x20] sm:$0xff]
    %v42 = vld [vmem:[%s0 + $0x28] sm:$0xff]
    %v43 = vld [vmem:[%s0 + $0x30] sm:$0xff]
    %v44 = vld [vmem:[%s0 + $0x38] sm:$0xff]
    %v45 = vld [vmem:[%s1] sm:$0xff]
    %v46 = vld [vmem:[%s1 + $0x8] sm:$0xff]
    %v47 = vld [vmem:[%s1 + $0x10] sm:$0xff]
    %v48 = vld [vmem:[%s1 + $0x18] sm:$0xff]
    %v49 = vld [vmem:[%s1 + $0x20] sm:$0xff]
    %v50 = vld [vmem:[%s1 + $0x28] sm:$0xff]
    %v51 = vld [vmem:[%s1 + $0x30] sm:$0xff]
    %v52 = vld [vmem:[%s1 + $0x38] sm:$0xff]
    %vm53 = vcmask 261120
    %v55 = vsel %vm53, %v37, 0
    %v58 = vsel %vm53, %v38, 0
    %v61 = vsel %vm53, %v39, 0
    %v64 = vsel %vm53, %v40, 0
    %v67 = vsel %vm53, %v41, 0
    %v70 = vsel %vm53, %v42, 0
    %v73 = vsel %vm53, %v43, 0
    %v76 = vsel %vm53, %v44, 0
    %78 = vmatprep.subr.mxu0 %v46
    %79 = vmatpush1.msra.mxu0 %v45
    %80 = vmatprep.subr.mxu0 %v48
    %81 = vmatpush1.msra.mxu0 %v47
    %82 = vmatprep.subr.mxu0 %v50
    %83 = vmatpush1.msra.mxu0 %v49
    %84 = vmatprep.subr.mxu0 %v52
    %85 = vmatpush1.msra.mxu0 %v51
    %86 = vmatprep.subr.mxu0 0.0
    %87 = vmatpush1.msra.mxu0 0.0
    %88 = vmatprep.subr.mxu0 0.0
    %89 = vmatpush1.msra.mxu0 0.0
    %90 = vmatprep.subr.mxu0 0.0
    %91 = vmatpush1.msra.mxu0 0.0
    %92 = vmatprep.subr.mxu0 0.0
    %93 = vmatpush1.msra.mxu0 0.0
    %94 = vmatprep.subr.mxu0 0.0
    %95 = vmatpush1.msra.mxu0 0.0
    %96 = vmatprep.subr.mxu0 0.0
    %97 = vmatpush1.msra.mxu0 0.0
    %98 = vmatprep.subr.mxu0 0.0
    %99 = vmatpush1.msra.mxu0 0.0
    %100 = vmatprep.subr.mxu0 0.0
    %101 = vmatpush1.msra.mxu0 0.0
    %102 = vmatprep.subr.mxu0 0.0
    %103 = vmatpush1.msra.mxu0 0.0
    %104 = vmatprep.subr.mxu0 0.0
    %105 = vmatpush1.msra.mxu0 0.0
    %106 = vmatprep.subr.mxu0 0.0
    %107 = vmatpush1.msra.mxu0 0.0
    %108 = vmatprep.subr.mxu0 0.0
    %109 = vmatpush1.msra.mxu0 0.0
    %110 = vmatprep.subr.mxu0 0.0
    %111 = vmatpush1.msra.mxu0 0.0
    %112 = vmatprep.subr.mxu0 0.0
    %113 = vmatpush1.msra.mxu0 0.0
    %114 = vmatprep.subr.mxu0 0.0
    %115 = vmatpush1.msra.mxu0 0.0
    %116 = vmatprep.subr.mxu0 0.0
    %117 = vmatpush1.msra.mxu0 0.0
    %118 = vmatprep.subr.mxu0 0.0
    %119 = vmatpush1.msra.mxu0 0.0
    %120 = vmatprep.subr.mxu0 0.0
    %121 = vmatpush1.msra.mxu0 0.0
    %122 = vmatprep.subr.mxu0 0.0
    %123 = vmatpush1.msra.mxu0 0.0
    %124 = vmatprep.subr.mxu0 0.0
    %125 = vmatpush1.msra.mxu0 0.0
    %126 = vmatprep.subr.mxu0 0.0
    %127 = vmatpush1.msra.mxu0 0.0
    %128 = vmatprep.subr.mxu0 0.0
    %129 = vmatpush1.msra.mxu0 0.0
    %130 = vmatprep.subr.mxu0 0.0
    %131 = vmatpush1.msra.mxu0 0.0
    %132 = vmatprep.subr.mxu0 0.0
    %133 = vmatpush1.msra.mxu0 0.0
    %134 = vmatprep.subr.mxu0 0.0
    %135 = vmatpush1.msra.mxu0 0.0
    %136 = vmatprep.subr.mxu0 0.0
    %137 = vmatpush1.msra.mxu0 0.0
    %138 = vmatprep.subr.mxu0 0.0
    %139 = vmatpush1.msra.mxu0 0.0
    %140 = vmatprep.subr.mxu0 0.0
    %141 = vmatpush1.msra.mxu0 0.0
    %142 = vmatprep.mubr.f32.mxu0 0.0
    %143 = vmatmul.mubr.f32.gmra.mrb[0].mxu0 %v55
    %v144 = vpop.f32.mrb[0].mxu0
    %v145 = vadd.f32 0.0, %v144
    %v146 = vpop.f32.mrb[0].mxu0
    %v147 = vadd.f32 0.0, %v146
    %148 = vmatprep.mubr.f32.mxu0 0.0
    %149 = vmatmul.mubr.f32.gmra.mrb[0].mxu0 %v58
    %v150 = vpop.f32.mrb[0].mxu0
    %v151 = vadd.f32 0.0, %v150
    %v152 = vpop.f32.mrb[0].mxu0
    %v153 = vadd.f32 0.0, %v152
    %154 = vmatprep.mubr.f32.mxu0 0.0
    %155 = vmatmul.mubr.f32.gmra.mrb[0].mxu0 %v61
    %v156 = vpop.f32.mrb[0].mxu0
    %v157 = vadd.f32 0.0, %v156
    %v158 = vpop.f32.mrb[0].mxu0
    %v159 = vadd.f32 0.0, %v158
    %160 = vmatprep.mubr.f32.mxu0 0.0
    %161 = vmatmul.mubr.f32.gmra.mrb[0].mxu0 %v64
    %v162 = vpop.f32.mrb[0].mxu0
    %v163 = vadd.f32 0.0, %v162
    %v164 = vpop.f32.mrb[0].mxu0
    %v165 = vadd.f32 0.0, %v164
    %166 = vmatprep.mubr.f32.mxu0 0.0
    %167 = vmatmul.mubr.f32.gmra.mrb[0].mxu0 %v67
    %v168 = vpop.f32.mrb[0].mxu0
    %v169 = vadd.f32 0.0, %v168
    %v170 = vpop.f32.mrb[0].mxu0
    %v171 = vadd.f32 0.0, %v170
    %172 = vmatprep.mubr.f32.mxu0 0.0
    %173 = vmatmul.mubr.f32.gmra.mrb[0].mxu0 %v70
    %v174 = vpop.f32.mrb[0].mxu0
    %v175 = vadd.f32 0.0, %v174
    %v176 = vpop.f32.mrb[0].mxu0
    %v177 = vadd.f32 0.0, %v176
    %178 = vmatprep.mubr.f32.mxu0 0.0
    %179 = vmatmul.mubr.f32.gmra.mrb[0].mxu0 %v73
    %v180 = vpop.f32.mrb[0].mxu0
    %v181 = vadd.f32 0.0, %v180
    %v182 = vpop.f32.mrb[0].mxu0
    %v183 = vadd.f32 0.0, %v182
    %184 = vmatprep.mubr.f32.mxu0 0.0
    %185 = vmatmul.mubr.f32.gmra.mrb[0].mxu0 %v76
    %v186 = vpop.f32.mrb[0].mxu0
    %v187 = vadd.f32 0.0, %v186
    %v188 = vpop.f32.mrb[0].mxu0
    %v189 = vadd.f32 0.0, %v188
    %190 = vdwg.mxu0
    %v191 = vadd.f32 %v145, %v151
    %v192 = vadd.f32 %v191, %v157
    %v193 = vadd.f32 %v192, %v163
    %v194 = vadd.f32 %v193, %v169
    %v195 = vadd.f32 %v194, %v175
    %v196 = vadd.f32 %v195, %v181
    %v197 = vadd.f32 %v196, %v187
    %v198 = vrot.slane %v197, 4
    %v199 = vadd.f32 %v197, %v198
    %v200 = vrot.slane %v199, 2
    %v201 = vadd.f32 %v199, %v200
    %v202 = vrot.slane %v201, 1
    %v203 = vadd.f32 %v201, %v202
    %v204 = vadd.f32 %v147, %v153
    %v205 = vadd.f32 %v204, %v159
    %v206 = vadd.f32 %v205, %v165
    %v207 = vadd.f32 %v206, %v171
    %v208 = vadd.f32 %v207, %v177
    %v209 = vadd.f32 %v208, %v183
    %v210 = vadd.f32 %v209, %v189
    %v211 = vrot.slane %v210, 4
    %v212 = vadd.f32 %v210, %v211
    %v213 = vrot.slane %v212, 2
    %v214 = vadd.f32 %v212, %v213
    %v215 = vrot.slane %v214, 1
    %v216 = vadd.f32 %v214, %v215
    %v217 = vrcp.pop 64.0
    %v218 = vmul.f32 %v203, %v217
    %v219 = vmul.f32 %v216, %v217
    %v220 = vsub.f32 %v145, %v218
    %v221 = vsub.f32 %v147, %v219
    %v222 = vsub.f32 %v151, %v218
    %v223 = vsub.f32 %v153, %v219
    %v224 = vsub.f32 %v157, %v218
    %v225 = vsub.f32 %v159, %v219
    %v226 = vsub.f32 %v163, %v218
    %v227 = vsub.f32 %v165, %v219
    %v228 = vsub.f32 %v169, %v218
    %v229 = vsub.f32 %v171, %v219
    %v230 = vsub.f32 %v175, %v218
    %v231 = vsub.f32 %v177, %v219
    %v232 = vsub.f32 %v181, %v218
    %v233 = vsub.f32 %v183, %v219
    %v234 = vsub.f32 %v187, %v218
    %v235 = vsub.f32 %v189, %v219
    %v236 = vmul.f32 %v220, %v220
    %v237 = vmul.f32 %v221, %v221
    %v238 = vmul.f32 %v222, %v222
    %v239 = vmul.f32 %v223, %v223
    %v240 = vmul.f32 %v224, %v224
    %v241 = vmul.f32 %v225, %v225
    %v242 = vmul.f32 %v226, %v226
    %v243 = vmul.f32 %v227, %v227
    %v244 = vmul.f32 %v228, %v228
    %v245 = vmul.f32 %v229, %v229
    %v246 = vmul.f32 %v230, %v230
    %v247 = vmul.f32 %v231, %v231
    %v248 = vmul.f32 %v232, %v232
    %v249 = vmul.f32 %v233, %v233
    %v250 = vmul.f32 %v234, %v234
    %v251 = vmul.f32 %v235, %v235
    %v252 = vadd.f32 %v236, %v238
    %v253 = vadd.f32 %v252, %v240
    %v254 = vadd.f32 %v253, %v242
    %v255 = vadd.f32 %v254, %v244
    %v256 = vadd.f32 %v255, %v246
    %v257 = vadd.f32 %v256, %v248
    %v258 = vadd.f32 %v257, %v250
    %v259 = vrot.slane %v258, 4
    %v260 = vadd.f32 %v258, %v259
    %v261 = vrot.slane %v260, 2
    %v262 = vadd.f32 %v260, %v261
    %v263 = vrot.slane %v262, 1
    %v264 = vadd.f32 %v262, %v263
    %v265 = vadd.f32 %v237, %v239
    %v266 = vadd.f32 %v265, %v241
    %v267 = vadd.f32 %v266, %v243
    %v268 = vadd.f32 %v267, %v245
    %v269 = vadd.f32 %v268, %v247
    %v270 = vadd.f32 %v269, %v249
    %v271 = vadd.f32 %v270, %v251
    %v272 = vrot.slane %v271, 4
    %v273 = vadd.f32 %v271, %v272
    %v274 = vrot.slane %v273, 2
    %v275 = vadd.f32 %v273, %v274
    %v276 = vrot.slane %v275, 1
    %v277 = vadd.f32 %v275, %v276
    %v278 = vmul.f32 %v264, %v217
    %v279 = vmul.f32 %v277, %v217
    %v280 = vld [vmem:[%s2] sm:$0x3]
    %v281 = vadd.f32 %v278, 1e-05
    %v282 = vadd.f32 %v279, 1e-05
    %v283 = vrsqrt.pop %v281
    %v284 = vrsqrt.pop %v282
    %v287 = vcombine.low %v283, %v284
    %v289 = vunpack.c.l.s4 1966171168
    %v290 = vunpack.c.0.s8 %v289
    %v291 = vlaneseq
    %v292 = vshrl.u32 %v291, 7
    %v293 = vsub.s32 %v290, %v292
    %v294 = vrot.slane %v287, %v293
    %v296 = vunpack.c.l.s4 1966171168
    %v297 = vunpack.c.0.s8 %v296
    %v298 = vlaneseq
    %v299 = vshrl.u32 %v298, 7
    %v300 = vsub.s32 %v297, %v299
    %v301 = vrot.slane %v294, %v300
    %v303 = vmul.f32 %v280, %v301
    %v304 = vld [vmem:[%s3] sm:$0x3]
    %v306 = vlaneseq
    %v307 = vshrl.u32 %v306, 7
    %v308 = vsub.s32 0, %v307
    %v309 = vrot.slane %v303, %v308
    %v310 = vlaneseq
    %v311 = vshrl.u32 %v310, 7
    %v312 = vsub.s32 1, %v311
    %v313 = vrot.slane %v303, %v312
    %v316 = vmul.f32 %v218, %v309
    %v317 = vmul.f32 %v219, %v313
    %v320 = vcombine.low %v316, %v317
    %v322 = vunpack.c.l.s4 1966171168
    %v323 = vunpack.c.0.s8 %v322
    %v324 = vlaneseq
    %v325 = vshrl.u32 %v324, 7
    %v326 = vsub.s32 %v323, %v325
    %v327 = vrot.slane %v320, %v326
    %v329 = vunpack.c.l.s4 1966171168
    %v330 = vunpack.c.0.s8 %v329
    %v331 = vlaneseq
    %v332 = vshrl.u32 %v331, 7
    %v333 = vsub.s32 %v330, %v332
    %v334 = vrot.slane %v327, %v333
    %v336 = vsub.f32 %v304, %v334
    %v337 = vmul.f32 %v145, %v309
    %v338 = vmul.f32 %v147, %v313
    %v339 = vmul.f32 %v151, %v309
    %v340 = vmul.f32 %v153, %v313
    %v341 = vmul.f32 %v157, %v309
    %v342 = vmul.f32 %v159, %v313
    %v343 = vmul.f32 %v163, %v309
    %v344 = vmul.f32 %v165, %v313
    %v345 = vmul.f32 %v169, %v309
    %v346 = vmul.f32 %v171, %v313
    %v347 = vmul.f32 %v175, %v309
    %v348 = vmul.f32 %v177, %v313
    %v349 = vmul.f32 %v181, %v309
    %v350 = vmul.f32 %v183, %v313
    %v351 = vmul.f32 %v187, %v309
    %v352 = vmul.f32 %v189, %v313
    %v354 = vlaneseq
    %v355 = vshrl.u32 %v354, 7
    %v356 = vsub.s32 0, %v355
    %v357 = vrot.slane %v336, %v356
    %v358 = vlaneseq
    %v359 = vshrl.u32 %v358, 7
    %v360 = vsub.s32 1, %v359
    %v361 = vrot.slane %v336, %v360
    %v364 = vadd.f32 %v337, %v357
    %v365 = vadd.f32 %v338, %v361
    %v366 = vadd.f32 %v339, %v357
    %v367 = vadd.f32 %v340, %v361
    %v368 = vadd.f32 %v341, %v357
    %v369 = vadd.f32 %v342, %v361
    %v370 = vadd.f32 %v343, %v357
    %v371 = vadd.f32 %v344, %v361
    %v372 = vadd.f32 %v345, %v357
    %v373 = vadd.f32 %v346, %v361
    %v374 = vadd.f32 %v347, %v357
    %v375 = vadd.f32 %v348, %v361
    %v376 = vadd.f32 %v349, %v357
    %v377 = vadd.f32 %v350, %v361
    %v378 = vadd.f32 %v351, %v357
    %v379 = vadd.f32 %v352, %v361
    %v380 = vmax.f32 %v364, 0.0
    %v381 = vmax.f32 %v365, 0.0
    %v382 = vmax.f32 %v366, 0.0
    %v383 = vmax.f32 %v367, 0.0
    %v384 = vmax.f32 %v368, 0.0
    %v385 = vmax.f32 %v369, 0.0
    %v386 = vmax.f32 %v370, 0.0
    %v387 = vmax.f32 %v371, 0.0
    %v388 = vmax.f32 %v372, 0.0
    %v389 = vmax.f32 %v373, 0.0
    %v390 = vmax.f32 %v374, 0.0
    %v391 = vmax.f32 %v375, 0.0
    %v392 = vmax.f32 %v376, 0.0
    %v393 = vmax.f32 %v377, 0.0
    %v394 = vmax.f32 %v378, 0.0
    %v395 = vmax.f32 %v379, 0.0
    %v396 = vld [vmem:[#allocation2] sm:$0xff]
    %v397 = vld [vmem:[#allocation2 + $0x8] sm:$0xff]
    %v398 = vld [vmem:[#allocation2 + $0x10] sm:$0xff]
    %v399 = vld [vmem:[#allocation2 + $0x18] sm:$0xff]
    %v400 = vld [vmem:[#allocation2 + $0x20] sm:$0xff]
    %v401 = vld [vmem:[#allocation2 + $0x28] sm:$0xff]
    %v402 = vld [vmem:[#allocation2 + $0x30] sm:$0xff]
    %v403 = vld [vmem:[#allocation2 + $0x38] sm:$0xff]
    %v404 = vld [vmem:[#allocation2 + $0x40] sm:$0xff]
    %v405 = vld [vmem:[#allocation2 + $0x48] sm:$0xff]
    %v406 = vld [vmem:[#allocation2 + $0x50] sm:$0xff]
    %v407 = vld [vmem:[#allocation2 + $0x58] sm:$0xff]
    %v408 = vld [vmem:[#allocation2 + $0x60] sm:$0xff]
    %v409 = vld [vmem:[#allocation2 + $0x68] sm:$0xff]
    %v410 = vld [vmem:[#allocation2 + $0x70] sm:$0xff]
    %v411 = vld [vmem:[#allocation2 + $0x78] sm:$0xff]
    %v412 = vld [vmem:[#allocation2 + $0x80] sm:$0xff]
    %v413 = vld [vmem:[#allocation2 + $0x88] sm:$0xff]
    %v414 = vld [vmem:[#allocation2 + $0x90] sm:$0xff]
    %v415 = vld [vmem:[#allocation2 + $0x98] sm:$0xff]
    %v416 = vld [vmem:[#allocation2 + $0xa0] sm:$0xff]
    %v417 = vld [vmem:[#allocation2 + $0xa8] sm:$0xff]
    %v418 = vld [vmem:[#allocation2 + $0xb0] sm:$0xff]
    %v419 = vld [vmem:[#allocation2 + $0xb8] sm:$0xff]
    %v420 = vld [vmem:[#allocation2 + $0xc0] sm:$0xff]
    %v421 = vld [vmem:[#allocation2 + $0xc8] sm:$0xff]
    %v422 = vld [vmem:[#allocation2 + $0xd0] sm:$0xff]
    %v423 = vld [vmem:[#allocation2 + $0xd8] sm:$0xff]
    %v424 = vld [vmem:[#allocation2 + $0xe0] sm:$0xff]
    %v425 = vld [vmem:[#allocation2 + $0xe8] sm:$0xff]
    %v426 = vld [vmem:[#allocation2 + $0xf0] sm:$0xff]
    %v427 = vld [vmem:[#allocation2 + $0xf8] sm:$0xff]
    %v428 = vld [vmem:[%s5] sm:$0x1]
    %v430 = vlaneseq
    %v431 = vshrl.u32 %v430, 7
    %v432 = vsub.s32 0, %v431
    %v433 = vrot.slane %v428, %v432
    %435 = vmatprep.subr.mxu0 0.0
    %436 = vmatpush1.msra.mxu0 %v396
    %437 = vmatprep.subr.mxu0 0.0
    %438 = vmatpush1.msra.mxu0 %v397
    %439 = vmatprep.subr.mxu0 0.0
    %440 = vmatpush1.msra.mxu0 %v398
    %441 = vmatprep.subr.mxu0 0.0
    %442 = vmatpush1.msra.mxu0 %v399
    %443 = vmatprep.subr.mxu0 0.0
    %444 = vmatpush1.msra.mxu0 %v400
    %445 = vmatprep.subr.mxu0 0.0
    %446 = vmatpush1.msra.mxu0 %v401
    %447 = vmatprep.subr.mxu0 0.0
    %448 = vmatpush1.msra.mxu0 %v402
    %449 = vmatprep.subr.mxu0 0.0
    %450 = vmatpush1.msra.mxu0 %v403
    %451 = vmatprep.subr.mxu0 0.0
    %452 = vmatpush1.msra.mxu0 %v404
    %453 = vmatprep.subr.mxu0 0.0
    %454 = vmatpush1.msra.mxu0 %v405
    %455 = vmatprep.subr.mxu0 0.0
    %456 = vmatpush1.msra.mxu0 %v406
    %457 = vmatprep.subr.mxu0 0.0
    %458 = vmatpush1.msra.mxu0 %v407
    %459 = vmatprep.subr.mxu0 0.0
    %460 = vmatpush1.msra.mxu0 %v408
    %461 = vmatprep.subr.mxu0 0.0
    %462 = vmatpush1.msra.mxu0 %v409
    %463 = vmatprep.subr.mxu0 0.0
    %464 = vmatpush1.msra.mxu0 %v410
    %465 = vmatprep.subr.mxu0 0.0
    %466 = vmatpush1.msra.mxu0 %v411
    %467 = vmatprep.subr.mxu0 0.0
    %468 = vmatpush1.msra.mxu0 %v412
    %469 = vmatprep.subr.mxu0 0.0
    %470 = vmatpush1.msra.mxu0 %v413
    %471 = vmatprep.subr.mxu0 0.0
    %472 = vmatpush1.msra.mxu0 %v414
    %473 = vmatprep.subr.mxu0 0.0
    %474 = vmatpush1.msra.mxu0 %v415
    %475 = vmatprep.subr.mxu0 0.0
    %476 = vmatpush1.msra.mxu0 %v416
    %477 = vmatprep.subr.mxu0 0.0
    %478 = vmatpush1.msra.mxu0 %v417
    %479 = vmatprep.subr.mxu0 0.0
    %480 = vmatpush1.msra.mxu0 %v418
    %481 = vmatprep.subr.mxu0 0.0
    %482 = vmatpush1.msra.mxu0 %v419
    %483 = vmatprep.subr.mxu0 0.0
    %484 = vmatpush1.msra.mxu0 %v420
    %485 = vmatprep.subr.mxu0 0.0
    %486 = vmatpush1.msra.mxu0 %v421
    %487 = vmatprep.subr.mxu0 0.0
    %488 = vmatpush1.msra.mxu0 %v422
    %489 = vmatprep.subr.mxu0 0.0
    %490 = vmatpush1.msra.mxu0 %v423
    %491 = vmatprep.subr.mxu0 0.0
    %492 = vmatpush1.msra.mxu0 %v424
    %493 = vmatprep.subr.mxu0 0.0
    %494 = vmatpush1.msra.mxu0 %v425
    %495 = vmatprep.subr.mxu0 0.0
    %496 = vmatpush1.msra.mxu0 %v426
    %497 = vmatprep.subr.mxu0 0.0
    %498 = vmatpush1.msra.mxu0 %v427
    %499 = vmatprep.mubr.f32.mxu0 %v381
    %500 = vmatmul.mubr.f32.gmra.mrb[0].mxu0 %v380
    %v501 = vpop.f32.mrb[0].mxu0
    %v502 = vadd.f32 %v433, %v501
    %v503 = vpop.f32.mrb[0].mxu0
    %504 = vmatprep.mubr.f32.mxu0 %v383
    %505 = vmatmul.mubr.f32.gmra.mrb[0].mxu0 %v382
    %v506 = vpop.f32.mrb[0].mxu0
    %v507 = vadd.f32 %v433, %v506
    %v508 = vpop.f32.mrb[0].mxu0
    %509 = vmatprep.mubr.f32.mxu0 %v385
    %510 = vmatmul.mubr.f32.gmra.mrb[0].mxu0 %v384
    %v511 = vpop.f32.mrb[0].mxu0
    %v512 = vadd.f32 %v433, %v511
    %v513 = vpop.f32.mrb[0].mxu0
    %514 = vmatprep.mubr.f32.mxu0 %v387
    %515 = vmatmul.mubr.f32.gmra.mrb[0].mxu0 %v386
    %v516 = vpop.f32.mrb[0].mxu0
    %v517 = vadd.f32 %v433, %v516
    %v518 = vpop.f32.mrb[0].mxu0
    %519 = vmatprep.mubr.f32.mxu0 %v389
    %520 = vmatmul.mubr.f32.gmra.mrb[0].mxu0 %v388
    %v521 = vpop.f32.mrb[0].mxu0
    %v522 = vadd.f32 %v433, %v521
    %v523 = vpop.f32.mrb[0].mxu0
    %524 = vmatprep.mubr.f32.mxu0 %v391
    %525 = vmatmul.mubr.f32.gmra.mrb[0].mxu0 %v390
    %v526 = vpop.f32.mrb[0].mxu0
    %v527 = vadd.f32 %v433, %v526
    %v528 = vpop.f32.mrb[0].mxu0
    %529 = vmatprep.mubr.f32.mxu0 %v393
    %530 = vmatmul.mubr.f32.gmra.mrb[0].mxu0 %v392
    %v531 = vpop.f32.mrb[0].mxu0
    %v532 = vadd.f32 %v433, %v531
    %v533 = vpop.f32.mrb[0].mxu0
    %534 = vmatprep.mubr.f32.mxu0 %v395
    %535 = vmatmul.mubr.f32.gmra.mrb[0].mxu0 %v394
    %v536 = vpop.f32.mrb[0].mxu0
    %v537 = vadd.f32 %v433, %v536
    %v538 = vpop.f32.mrb[0].mxu0
    %539 = vdwg.mxu0
    %vm540 = vcmask 15360
    %541 = vst.msk [vmem:[%s6] sm:$0xff] %vm540, %v502
    %542 = vst.msk [vmem:[%s6 + $0x8] sm:$0xff] %vm540, %v507
    %543 = vst.msk [vmem:[%s6 + $0x10] sm:$0xff] %vm540, %v512
    %544 = vst.msk [vmem:[%s6 + $0x18] sm:$0xff] %vm540, %v517
    %545 = vst.msk [vmem:[%s6 + $0x20] sm:$0xff] %vm540, %v522
    %546 = vst.msk [vmem:[%s6 + $0x28] sm:$0xff] %vm540, %v527
    %547 = vst.msk [vmem:[%s6 + $0x30] sm:$0xff] %vm540, %v532
    %548 = vst.msk [vmem:[%s6 + $0x38] sm:$0xff] %vm540, %v537
    // Predicated region
    $region30: #{tpu_custom_call.1} parent=1 // pred_check
      _
    $region31: #{tpu_custom_call.1} parent=1 // pred_check_branch
      %550 = sbr.rel (0) target = $region33
    $region32: #{tpu_custom_call.1} parent=1 // pred_region
      _
    $region33: #{tpu_custom_call.1} parent=1 // pred_fallthru
      _
    // Predicated region
    $region34: #{tpu_custom_call.1} parent=1 // pred_check
      _
    $region35: #{tpu_custom_call.1} parent=1 // pred_check_branch
      %552 = sbr.rel (0) target = $region37
    $region36: #{tpu_custom_call.1} parent=1 // pred_region
      _
    $region37: #{tpu_custom_call.1} parent=1 // pred_fallthru
      _
    %553 = vsyncpa [#allocation3], 1

</llo_original>
